<compile_context>
chip_gen: v7x
topology: tpu7x:2x2x1
jax: 0.10.0
libtpu: 0.0.40
codegen_flags: <defaults>
</compile_context>

<pallas_src>
import functools

import jax
import jax.numpy as jnp
from jax.experimental import pallas as pl
from jax.experimental.pallas import tpu as pltpu


def _rpp_kernel(x_ref, w_ref, b_ref, o_ref, *, mxu_dtype):
    """One grid step: TN batch samples, fully batched on the MXU.

    x_ref: (TN, C, HW)  activations (HW on the lane axis)
    w_ref: (p, C)       Linear weight, torch [p, C] layout (no transpose)
    b_ref: (p, 1)       Linear bias as a column vector
    o_ref: (TN, p, C)   lane-dense output (C on the lane axis)
    """
    tn, _, hw = x_ref.shape
    p, c = w_ref.shape

    # Cast MXU operands to bf16 once; softmax math / accumulation stay in f32.
    x_mx = x_ref[...].astype(mxu_dtype)                                   # [TN,C,HW]
    w_mx = jnp.broadcast_to(w_ref[...].astype(mxu_dtype)[None], (tn, p, c))

    # Part-classifier logits, kept "transposed" so the softmax axis (p) lands on
    # sublanes and the big x tile is used as the canonical [K,N] matmul operand:
    #   logits[n,p,s] = sum_c w[p,c] * x[n,c,s] + b[p]
    logits = jnp.einsum("npc,ncs->nps", w_mx, x_mx,
                        preferred_element_type=jnp.float32) + b_ref[...]   # [TN,p,HW]

    # Softmax over the parts axis (cheap sublane reduction, p < 8 padding is
    # masked by logical shape).  Softmax denominator and the 1/HW pooling scale
    # are fused into a single approximate (EUP) reciprocal.
    m = jnp.max(logits, axis=1, keepdims=True)
    e = jnp.exp(logits - m)
    s = jnp.sum(e, axis=1, keepdims=True)
    scale = pl.reciprocal(s * float(hw), approx=True)                      # [TN,1,HW]
    prob = (e * scale).astype(mxu_dtype)                                   # [TN,p,HW]

    # Masked average pooling: y[n,p,c] = sum_s prob[n,p,s] * x[n,c,s].
    # Both operands contract their minor (HW) axis -- the flash 'bqd,bkd->bqk'
    # pattern -- so the big x tile is consumed as-is (no transpose).
    y = jnp.einsum("nps,ncs->npc", prob, x_mx,
                   preferred_element_type=jnp.float32)                     # [TN,p,C]
    o_ref[...] = y.astype(o_ref.dtype)


def _vmem_plan():
    """Generation-aware (block_budget_bytes, vmem_limit_bytes)."""
    mib = 1024 * 1024
    try:
        cap = int(pltpu.get_tpu_info().vmem_capacity_bytes)
    except Exception:
        cap = 64 * mib                    # conservative (v7x-sized) fallback
    if cap >= 100 * mib:
        # v4 / v5e / v5p / v6e class (128 MiB VMEM): feed the HBM pipeline with
        # large blocks; 16 MiB of headroom for weights + Mosaic internal scratch.
        return 96 * mib, 112 * mib
    # v7x class (64 MiB physical VMEM): tight budget, ample compile headroom.
    return min(24 * mib, (cap * 3) // 8), min(56 * mib, (cap * 7) // 8)


def _choose_batch_tile(N, C, HW, p, x_itemsize, block_budget_bytes, max_tn=128):
    """Samples per grid step, sized by a VMEM byte budget (no hard tn=8 cap)."""
    per_sample = (
        3 * C * HW * x_itemsize    # double-buffered x block + in-kernel f32 temp
        + C * HW * 2               # in-kernel bf16 copy of x
        + 2 * p * C * 4            # double-buffered output block
        + 6 * p * HW * 4           # logits / softmax intermediates (f32)
    )
    tn = max(1, min(N, block_budget_bytes // max(per_sample, 1), max_tn))
    # Keep the grid extent >= 2 whenever N allows, so both v7x TensorCores get
    # work under dimension_semantics=("parallel",).
    if N >= 2 and pl.cdiv(N, tn) < 2:
        tn = pl.cdiv(N, 2)
    return int(tn)


def rpp_forward(x_nchw, w, b, *, mxu_dtype=jnp.bfloat16):
    """RPP forward.

    Args:
      x_nchw: [N, C, H, W] feature map (f32 or bf16; bf16 halves DMA bytes).
      w:      [p, C] linear weight (torch.nn.Linear layout).
      b:      [p]    linear bias.

    Returns:
      list of p arrays, each of shape [N, C, 1, 1] (matching the PyTorch module).
    """
    N, C, H, W = x_nchw.shape
    p = w.shape[0]
    HW = H * W

    # Free, contiguous reshape: NCHW -> [N, C, HW]. No transpose, no extra HBM pass.
    x_ncs = x_nchw.reshape(N, C, HW)
    w_f32 = w.astype(jnp.float32)
    b_p1 = b.reshape(p, 1).astype(jnp.float32)

    block_budget, vmem_limit = _vmem_plan()
    tn = _choose_batch_tile(N, C, HW, p, x_ncs.dtype.itemsize, block_budget)
    grid_n = pl.cdiv(N, tn)   # ragged last block is handled by Pallas (writes masked)

    kernel = functools.partial(_rpp_kernel, mxu_dtype=mxu_dtype)

    # NOTE: if per-step compute ever drops below DMA time (tiny feature maps on
    # v7x), pipeline_mode=pl.Buffered(3) on the x spec is the next lever.
    y_npc = pl.pallas_call(
        kernel,
        out_shape=jax.ShapeDtypeStruct((N, p, C), jnp.float32),
        grid_spec=pltpu.PrefetchScalarGridSpec(
            num_scalar_prefetch=0,
            grid=(grid_n,),
            in_specs=[
                pl.BlockSpec((tn, C, HW), lambda n: (n, 0, 0)),
                pl.BlockSpec((p, C), lambda n: (0, 0)),
                pl.BlockSpec((p, 1), lambda n: (0, 0)),
            ],
            out_specs=pl.BlockSpec((tn, p, C), lambda n: (n, 0, 0)),
        ),
        compiler_params=pltpu.CompilerParams(
            dimension_semantics=("parallel",),
            vmem_limit_bytes=vmem_limit),
    )(x_ncs, w_f32, b_p1)

    # Split into the list-of-p [N, C, 1, 1] outputs, like the PyTorch module.
    return [y_npc[:, i, :].reshape(N, C, 1, 1) for i in range(p)]


def rpp_reference(x_nchw, w, b):
    """Pure-JAX f32 reference for verification."""
    N, C, H, W = x_nchw.shape
    p = w.shape[0]
    vectors = jnp.transpose(x_nchw, (0, 2, 3, 1))              # [N,H,W,C]
    logits = jnp.einsum("nhwc,pc->nhwp", vectors, w) + b       # [N,H,W,p]
    prob = jax.nn.softmax(logits, axis=-1)                     # [N,H,W,p]
    y = jnp.einsum("nchw,nhwp->ncp", x_nchw, prob) / (H * W)   # [N,C,p]
    return [y[:, :, i].reshape(N, C, 1, 1) for i in range(p)]


def _run_case(key, N, C, H, W, P):
    kx, kw, kb = jax.random.split(key, 3)
    x = jax.random.normal(kx, (N, C, H, W), dtype=jnp.float32)
    w = jax.random.normal(kw, (P, C), dtype=jnp.float32) * 0.05   # Linear weight [p, C]
    b = jax.random.normal(kb, (P,), dtype=jnp.float32) * 0.05     # Linear bias  [p]

    y_kernel = jax.block_until_ready(rpp_forward(x, w, b))
    y_ref = rpp_reference(x, w, b)

    assert len(y_kernel) == P
    for yk, yr in zip(y_kernel, y_ref):
        assert yk.shape == (N, C, 1, 1)
        err = float(jnp.max(jnp.abs(yk - yr)))
        # bf16 MXU operands -> validate against the f32 reference with a relaxed
        # (but still semantics-discriminating) tolerance.
        assert jnp.allclose(yk, yr, atol=5e-3, rtol=5e-2), (
            f"mismatch vs reference (max abs diff {err})")


if __name__ == "__main__":
    key = jax.random.PRNGKey(0)
    k1, k2 = jax.random.split(key)
    # Small shapes consistent with the module: batch=2, channels=32, 8x8, p=6.
    # Exercises the grid>=2 rule (tn=1, 2 grid steps).
    _run_case(k1, N=2, C=32, H=8, W=8, P=6)
    # Larger batch with N not divisible by tn: exercises tn>1 batched einsums
    # and the ragged (cdiv) last block, per the review's correctness note.
    _run_case(k2, N=5, C=32, H=8, W=8, P=6)
    print("KERNEL_OK")
</pallas_src>

<mosaic_0001>
module attributes {stable_mosaic.version = 11 : i64} {
  func.func @_rpp_kernel(%arg0: i32, %arg1: memref<1x32x64xf32, #tpu.memory_space<vmem>>, %arg2: memref<6x32xf32, #tpu.memory_space<vmem>>, %arg3: memref<6x1xf32, #tpu.memory_space<vmem>>, %arg4: memref<1x6x32xf32, #tpu.memory_space<vmem>>) attributes {dimension_semantics = [#tpu.dimension_semantics<parallel>], iteration_bounds = array<i64: 2>, scalar_prefetch = 0 : i64, scratch_operands = 0 : i64, tpu.core_type = #tpu.core_type<tc>, window_params = [{transform_indices = @transform_0, window_bounds = array<i64: 1, 32, 64>}, {pipeline_mode = #tpu.pipeline_mode<synchronous>, transform_indices = @transform_1, window_bounds = array<i64: 6, 32>}, {pipeline_mode = #tpu.pipeline_mode<synchronous>, transform_indices = @transform_2, window_bounds = array<i64: 6, 1>}, {transform_indices = @transform_3, window_bounds = array<i64: 1, 6, 32>}]} {
    %c0 = arith.constant 0 : index
    %c0_0 = arith.constant 0 : index
    %c0_1 = arith.constant 0 : index
    %0 = vector.load %arg1[%c0, %c0_0, %c0_1] : memref<1x32x64xf32, #tpu.memory_space<vmem>>, vector<1x32x64xf32>
    %1 = arith.truncf %0 : vector<1x32x64xf32> to vector<1x32x64xbf16>
    %c0_2 = arith.constant 0 : index
    %c0_3 = arith.constant 0 : index
    %2 = vector.load %arg2[%c0_2, %c0_3] : memref<6x32xf32, #tpu.memory_space<vmem>>, vector<6x32xf32>
    %3 = arith.truncf %2 : vector<6x32xf32> to vector<6x32xbf16>
    %4 = vector.shape_cast %3 : vector<6x32xbf16> to vector<1x6x32xbf16>
    "tpu.trace_start"() <{level = 10 : i32, message = "npc,ncs->nps"}> : () -> ()
    %cst = arith.constant dense<0.000000e+00> : vector<1x6x64xf32>
    %5 = tpu.matmul %4, %1, %cst {dimension_numbers = #tpu.dot_dimension_numbers<[2], [1], [1], [2], [0, 0, 0, 1, 1, 2], [0], [0]>} : vector<1x6x32xbf16>, vector<1x32x64xbf16>, vector<1x6x64xf32> -> vector<1x6x64xf32>
    "tpu.trace_stop"() : () -> ()
    %c0_4 = arith.constant 0 : index
    %c0_5 = arith.constant 0 : index
    %6 = vector.load %arg3[%c0_4, %c0_5] : memref<6x1xf32, #tpu.memory_space<vmem>>, vector<6x1xf32>
    %7 = vector.shape_cast %6 : vector<6x1xf32> to vector<1x6x1xf32>
    %8 = vector.broadcast %7 : vector<1x6x1xf32> to vector<1x6x64xf32>
    %9 = arith.addf %5, %8 : vector<1x6x64xf32>
    %cst_6 = arith.constant dense<0xFF800000> : vector<1x64xf32>
    %10 = vector.multi_reduction <maximumf>, %9, %cst_6 [1] : vector<1x6x64xf32> to vector<1x64xf32>
    %11 = vector.shape_cast %10 : vector<1x64xf32> to vector<1x1x64xf32>
    %12 = vector.broadcast %11 : vector<1x1x64xf32> to vector<1x6x64xf32>
    %13 = arith.subf %9, %12 : vector<1x6x64xf32>
    %14 = math.exp %13 : vector<1x6x64xf32>
    %cst_7 = arith.constant dense<0.000000e+00> : vector<1x64xf32>
    %15 = vector.multi_reduction <add>, %14, %cst_7 [1] : vector<1x6x64xf32> to vector<1x64xf32>
    %16 = vector.shape_cast %15 : vector<1x64xf32> to vector<1x1x64xf32>
    %cst_8 = arith.constant 6.400000e+01 : f32
    %17 = vector.broadcast %cst_8 : f32 to vector<1x1x64xf32>
    %18 = arith.mulf %16, %17 : vector<1x1x64xf32>
    %19 = tpu.reciprocal %18 {approx = true} : vector<1x1x64xf32> -> vector<1x1x64xf32>
    %20 = vector.broadcast %19 : vector<1x1x64xf32> to vector<1x6x64xf32>
    %21 = arith.mulf %14, %20 : vector<1x6x64xf32>
    %22 = arith.truncf %21 : vector<1x6x64xf32> to vector<1x6x64xbf16>
    "tpu.trace_start"() <{level = 10 : i32, message = "nps,ncs->npc"}> : () -> ()
    %cst_9 = arith.constant dense<0.000000e+00> : vector<1x6x32xf32>
    %23 = tpu.matmul %22, %1, %cst_9 {dimension_numbers = #tpu.dot_dimension_numbers<[2], [2], [1], [1], [0, 0, 0, 1, 1, 1], [0], [0]>} : vector<1x6x64xbf16>, vector<1x32x64xbf16>, vector<1x6x32xf32> -> vector<1x6x32xf32>
    "tpu.trace_stop"() : () -> ()
    %c0_10 = arith.constant 0 : index
    %c0_11 = arith.constant 0 : index
    %c0_12 = arith.constant 0 : index
    %24 = vector.load %arg4[%c0_10, %c0_11, %c0_12] : memref<1x6x32xf32, #tpu.memory_space<vmem>>, vector<1x6x32xf32>
    tpu.vector_store %arg4[%c0_10, %c0_11, %c0_12], %23 {strides = array<i32>} : memref<1x6x32xf32, #tpu.memory_space<vmem>>, vector<1x6x32xf32>,
    return
  }
  func.func @transform_0(%arg0: i32) -> (i32, i32, i32) {
    %c0_i32 = arith.constant 0 : i32
    %c0_i32_0 = arith.constant 0 : i32
    %c0_i32_1 = arith.constant 0 : i32
    return %arg0, %c0_i32, %c0_i32_0 : i32, i32, i32
  }
  func.func @transform_1(%arg0: i32) -> (i32, i32) {
    %c0_i32 = arith.constant 0 : i32
    %c0_i32_0 = arith.constant 0 : i32
    %c0_i32_1 = arith.constant 0 : i32
    return %c0_i32, %c0_i32_0 : i32, i32
  }
  func.func @transform_2(%arg0: i32) -> (i32, i32) {
    %c0_i32 = arith.constant 0 : i32
    %c0_i32_0 = arith.constant 0 : i32
    %c0_i32_1 = arith.constant 0 : i32
    return %c0_i32, %c0_i32_0 : i32, i32
  }
  func.func @transform_3(%arg0: i32) -> (i32, i32, i32) {
    %c0_i32 = arith.constant 0 : i32
    %c0_i32_0 = arith.constant 0 : i32
    %c0_i32_1 = arith.constant 0 : i32
    return %arg0, %c0_i32, %c0_i32_0 : i32, i32, i32
  }
}

</mosaic_0001>

<llo_original>
// kernel: tpu_custom_call.1
$region0: #{tpu_custom_call.1}
  #allocation0 [shape = 'u32[]', space=smem, size = 0x4, offset = 0x4, fixed_abs, tag = 'smem constant byte address 0x4 - core index']
  #allocation1 [shape = 'u32[144,128]{1,0:T(1,128)}', space=vmem, size = 0x12000, scoped, tag = 'internal scratch']
  %s0 = inlined_call_operand.hbm [shape: f32[2,32,64], index: 0, kind: input, shape index: {}]
  %s1 = inlined_call_operand.vmem [shape: f32[6,32], index: 1, kind: input, shape index: {}]
  %s2 = inlined_call_operand.vmem [shape: f32[6,1], index: 2, kind: input, shape index: {}]
  %s3 = inlined_call_operand.vmem [shape: f32[2,6,32], index: 3, kind: output, shape index: {}]
  %s4 = sld [smem:[#allocation0]]
  $region49: #{tpu_custom_call.1} parent=0
    _
  %s6 = ssub.s32 1, %s4
  %s7 = scalar_select 0, %s6, %s4
  $region1: #{tpu_custom_call.1} parent=0
    #allocation2 [shape = 'u8[32768]{0}', space=vmem, size = 0x8000, scoped, tag = 'input window, operand 0']
    #allocation3 [shape = 's32[2]{0}', space=sflag, size = 0x8, scoped, tag = 'scoped memory for tpu_custom_call.1']
    %8 = vsyncpa [#allocation3], 0
    %s9 = scalar_lea.sflag [#allocation3], 1
    %10 = vsyncpa %s9, 0
    loop: start=0, step=1, limit=4
    $region2: #{tpu_custom_call.1} parent=1 // loop_pre_header
      _
    $region3: #{tpu_custom_call.1} parent=1 // loop_header
      %s12 = sphi 0, %s16
      %p13 = scmp.ge.s32.totalorder %s12, 4
      %s22 = sphi 0, %s24
      %s25 = sphi 0, %s22
      %s26 = sphi 0, %s25
      %s42 = sphi 0, %s26
      %s46 = sphi 0, %s46
      %s48 = sphi 0, %s46
      %s49 = sphi 0, %s48
      %s63 = sphi 0, %s49
      %s67 = sphi 0, %s67
      %s69 = sphi 0, %s67
      %s70 = sphi 0, %s69
      %s84 = sphi 0, %s70
      %s90 = sphi 0, %s92
      %s93 = sphi 0, %s90
      %s94 = sphi 0, %s93
      %s110 = sphi 0, %s94
    $region4: #{tpu_custom_call.1} parent=1 // loop_header_branch
      %15 = sbr.rel (%p13) target = $region8
    $region5: #{tpu_custom_call.1} parent=1 // loop_body
      %s17 = ssub.s32 %s12, 1
      %s18 = ssub.s32 %s12, 2
      %s19 = sadd.s32 %s12, 1
      %s20 = ssub.s32 %s12, %s19
      %p21 = scmp.eq.s32.totalorder %s20, 0
      %s23 = sadd.s32 %s22, 1
      %s24 = scalar_select %p21, %s22, %s23
      %p27 = pneg %p21
      %p28 = scmp.eq.s32.totalorder %s12, 1
      %p29 = por %p27, %p28
      %p30 = scmp.ne.s32.totalorder %s22, %s25
      %p31 = scmp.eq.s32.totalorder %s12, 0
      %p32 = por %p30, %p31
      %p33 = scmp.ne.s32.totalorder %s22, %s25
      %p34 = scmp.eq.s32.totalorder %s17, 1
      %p35 = por %p33, %p34
      %p36 = scmp.ne.s32.totalorder %s25, %s26
      %p37 = scmp.eq.s32.totalorder %s17, 0
      %p38 = por %p36, %p37
      %p39 = scmp.ne.s32.totalorder %s25, %s26
      %p40 = scmp.eq.s32.totalorder %s18, 1
      %p41 = por %p39, %p40
      %p43 = scmp.ne.s32.totalorder %s26, %s42
      %p44 = scmp.eq.s32.totalorder %s18, 0
      %p45 = por %p43, %p44
      %s47 = sadd.s32 %s46, 1
      %p50 = scmp.eq.s32.totalorder %s12, 1
      %p51 = scmp.ne.s32.totalorder %s46, %s48
      %p52 = scmp.eq.s32.totalorder %s12, 0
      %p53 = por %p51, %p52
      %p54 = scmp.ne.s32.totalorder %s46, %s48
      %p55 = scmp.eq.s32.totalorder %s17, 1
      %p56 = por %p54, %p55
      %p57 = scmp.ne.s32.totalorder %s48, %s49
      %p58 = scmp.eq.s32.totalorder %s17, 0
      %p59 = por %p57, %p58
      %p60 = scmp.ne.s32.totalorder %s48, %s49
      %p61 = scmp.eq.s32.totalorder %s18, 1
      %p62 = por %p60, %p61
      %p64 = scmp.ne.s32.totalorder %s49, %s63
      %p65 = scmp.eq.s32.totalorder %s18, 0
      %p66 = por %p64, %p65
      %s68 = sadd.s32 %s67, 1
      %p71 = scmp.eq.s32.totalorder %s12, 1
      %p72 = scmp.ne.s32.totalorder %s67, %s69
      %p73 = scmp.eq.s32.totalorder %s12, 0
      %p74 = por %p72, %p73
      %p75 = scmp.ne.s32.totalorder %s67, %s69
      %p76 = scmp.eq.s32.totalorder %s17, 1
      %p77 = por %p75, %p76
      %p78 = scmp.ne.s32.totalorder %s69, %s70
      %p79 = scmp.eq.s32.totalorder %s17, 0
      %p80 = por %p78, %p79
      %p81 = scmp.ne.s32.totalorder %s69, %s70
      %p82 = scmp.eq.s32.totalorder %s18, 1
      %p83 = por %p81, %p82
      %p85 = scmp.ne.s32.totalorder %s70, %s84
      %p86 = scmp.eq.s32.totalorder %s18, 0
      %p87 = por %p85, %p86
      %s88 = ssub.s32 %s12, %s19
      %p89 = scmp.eq.s32.totalorder %s88, 0
      %s91 = sadd.s32 %s90, 1
      %s92 = scalar_select %p89, %s90, %s91
      %p95 = pneg %p89
      %p96 = scmp.eq.s32.totalorder %s12, 1
      %p97 = por %p95, %p96
      %p98 = scmp.ne.s32.totalorder %s90, %s93
      %p99 = scmp.eq.s32.totalorder %s12, 0
      %p100 = por %p98, %p99
      %p101 = scmp.ne.s32.totalorder %s90, %s93
      %p102 = scmp.eq.s32.totalorder %s17, 1
      %p103 = por %p101, %p102
      %p104 = scmp.ne.s32.totalorder %s93, %s94
      %p105 = scmp.eq.s32.totalorder %s17, 0
      %p106 = por %p104, %p105
      %p107 = scmp.ne.s32.totalorder %s93, %s94
      %p108 = scmp.eq.s32.totalorder %s18, 1
      %p109 = por %p107, %p108
      %p111 = scmp.ne.s32.totalorder %s94, %s110
      %p112 = scmp.eq.s32.totalorder %s18, 0
      %p113 = por %p111, %p112
      %p114 = scmp.le.s32.totalorder 1, %s12
      %p115 = scmp.lt.s32.totalorder %s12, 3
      %p116 = pnand %p114, %p115
      %p117 = pneg %p116
      // Predicated region
      $region9: #{tpu_custom_call.1} parent=5 // pred_check
        _
      $region10: #{tpu_custom_call.1} parent=5 // pred_check_branch
        %119 = sbr.rel (%p116) target = $region12
      $region11: #{tpu_custom_call.1} parent=5 // pred_region
        %s120 = ssub.s32 %s12, 1
        // Predicated region
        $region13: #{tpu_custom_call.1} parent=11 // pred_check
          %p121 = pneg %p59
        $region14: #{tpu_custom_call.1} parent=11 // pred_check_branch
          %123 = sbr.rel (%p121) target = $region16
        $region15: #{tpu_custom_call.1} parent=11 // pred_region
          _
        $region16: #{tpu_custom_call.1} parent=11 // pred_fallthru
          _
        // Predicated region
        $region17: #{tpu_custom_call.1} parent=11 // pred_check
          %p124 = pneg %p80
        $region18: #{tpu_custom_call.1} parent=11 // pred_check_branch
          %126 = sbr.rel (%p124) target = $region20
        $region19: #{tpu_custom_call.1} parent=11 // pred_region
          _
        $region20: #{tpu_custom_call.1} parent=11 // pred_fallthru
          _
      $region12: #{tpu_custom_call.1} parent=5 // pred_fallthru
        _
      %p127 = scmp.lt.s32.totalorder %s12, 2
      // Predicated region
      $region21: #{tpu_custom_call.1} parent=5 // pred_check
        %p128 = pneg %p127
      $region22: #{tpu_custom_call.1} parent=5 // pred_check_branch
        %130 = sbr.rel (%p128) target = $region24
      $region23: #{tpu_custom_call.1} parent=5 // pred_region
        // Predicated region
        $region25: #{tpu_custom_call.1} parent=23 // pred_check
          %p131 = pneg %p32
        $region26: #{tpu_custom_call.1} parent=23 // pred_check_branch
          %133 = sbr.rel (%p131) target = $region28
        $region27: #{tpu_custom_call.1} parent=23 // pred_region
          %s134 = sand.u32 %s22, 1
          %s135 = scalar_lea.sflag [#allocation3], %s134
          %s136 = sand.u32 %s22, 1
          %s137 = smul.addr %s136, 32
          %s138 = scalar_lea.vmem [#allocation2], %s137
          %s140 = ssub.s32 512, 512
          %141 = vsyncadd %s135, %s140
          %s142 = smul.addr %s12, 4
          %s143 = smul.addr %s142, 128
          %s144 = scalar_lea.hbm %s0, %s143
          %s145 = sshll.u32 %s138, 4
          %s146 = int_to_ptr.vmem [resolvable:$true] %s145
          %151 = dma.hbm_to_vmem [thread:$0]  %s144, 512, %s146, %s135, 128, 128, 8
        $region28: #{tpu_custom_call.1} parent=23 // pred_fallthru
          _
      $region24: #{tpu_custom_call.1} parent=5 // pred_fallthru
        _
      %p152 = scmp.le.s32.totalorder 1, %s12
      %p153 = scmp.lt.s32.totalorder %s12, 3
      %p154 = pnand %p152, %p153
      %p155 = pneg %p154
      // Predicated region
      $region29: #{tpu_custom_call.1} parent=5 // pred_check
        _
      $region30: #{tpu_custom_call.1} parent=5 // pred_check_branch
        %157 = sbr.rel (%p154) target = $region32
      $region31: #{tpu_custom_call.1} parent=5 // pred_region
        %s158 = ssub.s32 %s12, 1
        %s159 = sand.u32 %s25, 1
        %s160 = scalar_lea.sflag [#allocation3], %s159
        %s161 = sand.u32 %s25, 1
        %s162 = smul.addr %s161, 32
        %s163 = scalar_lea.vmem [#allocation2], %s162
        // Predicated region
        $region33: #{tpu_custom_call.1} parent=31 // pred_check
          %p164 = pneg %p38
        $region34: #{tpu_custom_call.1} parent=31 // pred_check_branch
          %166 = sbr.rel (%p164) target = $region36
        $region35: #{tpu_custom_call.1} parent=31 // pred_region
          %167 = dma.done %s160, 512
        $region36: #{tpu_custom_call.1} parent=31 // pred_fallthru
          _
        %s168 = sand.u32 %s25, 1
        %s169 = scalar_lea.sflag [#allocation3], %s168
        %s170 = sand.u32 %s25, 1
        %s171 = smul.addr %s170, 32
        %s172 = scalar_lea.vmem [#allocation2], %s171
        %p173 = pneg %p38
        %p174 = pneg %p35
        %p175 = pneg %p59
        %p176 = pneg %p56
        %p177 = pneg %p80
        %p178 = pneg %p77
        %p179 = pneg %p106
        %p180 = pneg %p103
        %p181 = scmp.lt.s32.totalorder %s17, 1
        %s182 = scalar_select %p181, %s17, 1
        %s183 = smul.addr %s182, 8
        %s184 = scalar_lea.vmem %s3, %s183
        %p185 = scmp.lt.s32.totalorder %s17, 1
        %s186 = scalar_select %p185, %s17, 1
        %s187 = smul.addr %s186, 8
        %s188 = scalar_lea.vmem %s3, %s187
        %v190 = vld [vmem:[%s163] sm:$0xff]
        %v191 = vld [vmem:[%s163 + $0x8] sm:$0xff]
        %v192 = vld [vmem:[%s163 + $0x10] sm:$0xff]
        %v193 = vld [vmem:[%s163 + $0x18] sm:$0xff]
        %v194 = vpack.c.bf16 %v191, %v190
        %v195 = vpack.c.bf16 %v193, %v192
        %v196 = vld [vmem:[%s1] sm:$0x3f]
        %v197 = vpack.c.bf16 %v196, %v196
        %v198 = vld [vmem:[%s2] sm:$0x3f]
        %200 = vset.pattern.permute.xlu0 0
        %201 = vperm.xlu0 %200, %v198
        %v202 = vpop.permute.xlu0 %201
        %vm204 = vcmask 261120
        %v206 = vsel %vm204, %v197, 0
        %208 = vmatprep.subr.bf16.mxu0 0
        %209 = vmatpush1.bf16.msra.mxu0 %v194
        %210 = vmatprep.subr.bf16.mxu0 0
        %211 = vmatpush1.bf16.msra.mxu0 %v195
        %212 = vmatprep.subr.bf16.mxu0 0
        %213 = vmatpush1.bf16.msra.mxu0 0
        %214 = vmatprep.subr.bf16.mxu0 0
        %215 = vmatpush1.bf16.msra.mxu0 0
        %216 = vmatprep.subr.bf16.mxu0 0
        %217 = vmatpush1.bf16.msra.mxu0 0
        %218 = vmatprep.subr.bf16.mxu0 0
        %219 = vmatpush1.bf16.msra.mxu0 0
        %220 = vmatprep.subr.bf16.mxu0 0
        %221 = vmatpush1.bf16.msra.mxu0 0
        %222 = vmatprep.subr.bf16.mxu0 0
        %223 = vmatpush1.bf16.msra.mxu0 0
        %224 = vmatprep.subr.bf16.mxu0 0
        %225 = vmatpush1.bf16.msra.mxu0 0
        %226 = vmatprep.subr.bf16.mxu0 0
        %227 = vmatpush1.bf16.msra.mxu0 0
        %228 = vmatprep.subr.bf16.mxu0 0
        %229 = vmatpush1.bf16.msra.mxu0 0
        %230 = vmatprep.subr.bf16.mxu0 0
        %231 = vmatpush1.bf16.msra.mxu0 0
        %232 = vmatprep.subr.bf16.mxu0 0
        %233 = vmatpush1.bf16.msra.mxu0 0
        %234 = vmatprep.subr.bf16.mxu0 0
        %235 = vmatpush1.bf16.msra.mxu0 0
        %236 = vmatprep.subr.bf16.mxu0 0
        %237 = vmatpush1.bf16.msra.mxu0 0
        %238 = vmatprep.subr.bf16.mxu0 0
        %239 = vmatpush1.bf16.msra.mxu0 0
        %240 = vmatprep.mubr.bf16.mxu0 0
        %241 = vmatmul.mubr.bf16.gmra.mrb[0].mxu0 %v206
        %v242 = vpop.f32.mrb[0].mxu0
        %v243 = vadd.f32 %v202, %v242
        %v244 = vpop.f32.mrb[0].mxu0
        %v245 = vpop.f32.mrb[0].mxu0
        %v246 = vpop.f32.mrb[0].mxu0
        %247 = vdwg.mxu0
        %vm248 = vcmask 521216
        %v249 = vsel %vm248, %v243, -inf
        %v250 = vrot.slane %v249, 4
        %v251 = vmax.f32 %v249, %v250
        %v252 = vrot.slane %v251, 2
        %v253 = vmax.f32 %v251, %v252
        %v254 = vrot.slane %v253, 1
        %v255 = vmax.f32 %v253, %v254
        %v256 = vsub.f32 %v243, %v255
        %v257 = vmul.f32 %v256, 1.442695
        %v258 = vpow.pop %v257
        %v259 = vsel %vm248, %v258, 0.0
        %v260 = vrot.slane %v259, 4
        %v261 = vadd.f32 %v259, %v260
        %v262 = vrot.slane %v261, 2
        %v263 = vadd.f32 %v261, %v262
        %v264 = vrot.slane %v263, 1
        %v265 = vadd.f32 %v263, %v264
        %v266 = vmul.f32 %v265, 64.0
        %v267 = vrcp.pop %v266
        %v268 = vmul.f32 %v258, %v267
        %v269 = vpack.c.bf16 %v268, %v268
        %vm270 = vcmask 523264
        %v272 = vsel %vm270, %v269, 0
        %v275 = vsel %vm270, %v194, 0
        %v278 = vsel %vm270, %v195, 0
        %280 = vmatprep.subr.bf16.mxu0 0
        %281 = vmatpush1.bf16.xpose.msra.mxu0 %v275
        %282 = vmatprep.subr.bf16.mxu0 0
        %283 = vmatpush1.bf16.xpose.msra.mxu0 %v278
        %284 = vmatprep.subr.bf16.mxu0 0
        %285 = vmatpush1.bf16.xpose.msra.mxu0 0
        %286 = vmatprep.subr.bf16.mxu0 0
        %287 = vmatpush1.bf16.xpose.msra.mxu0 0
        %288 = vmatprep.subr.bf16.mxu0 0
        %289 = vmatpush1.bf16.xpose.msra.mxu0 0
        %290 = vmatprep.subr.bf16.mxu0 0
        %291 = vmatpush1.bf16.xpose.msra.mxu0 0
        %292 = vmatprep.subr.bf16.mxu0 0
        %293 = vmatpush1.bf16.xpose.msra.mxu0 0
        %294 = vmatprep.subr.bf16.mxu0 0
        %295 = vmatpush1.bf16.xpose.msra.mxu0 0
        %296 = vmatprep.subr.bf16.mxu0 0
        %297 = vmatpush1.bf16.xpose.msra.mxu0 0
        %298 = vmatprep.subr.bf16.mxu0 0
        %299 = vmatpush1.bf16.xpose.msra.mxu0 0
        %300 = vmatprep.subr.bf16.mxu0 0
        %301 = vmatpush1.bf16.xpose.msra.mxu0 0
        %302 = vmatprep.subr.bf16.mxu0 0
        %303 = vmatpush1.bf16.xpose.msra.mxu0 0
        %304 = vmatprep.subr.bf16.mxu0 0
        %305 = vmatpush1.bf16.xpose.msra.mxu0 0
        %306 = vmatprep.subr.bf16.mxu0 0
        %307 = vmatpush1.bf16.xpose.msra.mxu0 0
        %308 = vmatprep.subr.bf16.mxu0 0
        %309 = vmatpush1.bf16.xpose.msra.mxu0 0
        %310 = vmatprep.subr.bf16.mxu0 0
        %311 = vmatpush1.bf16.xpose.msra.mxu0 0
        %312 = vmatprep.mubr.bf16.mxu0 0
        %313 = vmatmul.mubr.bf16.gmra.mrb[0].mxu0 %v272
        %v314 = vpop.f32.mrb[0].mxu0
        %v315 = vadd.f32 0.0, %v314
        %v316 = vpop.f32.mrb[0].mxu0
        %v317 = vpop.f32.mrb[0].mxu0
        %v318 = vpop.f32.mrb[0].mxu0
        %319 = vdwg.mxu0
        %vm320 = vcmask 259072
        %321 = vst.msk [vmem:[%s188] sm:$0x3f] %vm320, %v315
        %p322 = scmp.lt.s32.totalorder %s17, 1
        %s323 = scalar_select %p322, %s17, 1
        %s324 = smul.addr %s323, 8
        %s325 = scalar_lea.vmem %s3, %s324
        // Predicated region
        $region37: #{tpu_custom_call.1} parent=31 // pred_check
          %p326 = pneg %p103
        $region38: #{tpu_custom_call.1} parent=31 // pred_check_branch
          %328 = sbr.rel (%p326) target = $region40
        $region39: #{tpu_custom_call.1} parent=31 // pred_region
          _
        $region40: #{tpu_custom_call.1} parent=31 // pred_fallthru
          _
      $region32: #{tpu_custom_call.1} parent=5 // pred_fallthru
        _
      %p329 = scmp.le.s32.totalorder 2, %s12
      // Predicated region
      $region41: #{tpu_custom_call.1} parent=5 // pred_check
        %p330 = pneg %p329
      $region42: #{tpu_custom_call.1} parent=5 // pred_check_branch
        %332 = sbr.rel (%p330) target = $region44
      $region43: #{tpu_custom_call.1} parent=5 // pred_region
        %s333 = ssub.s32 %s12, 2
        // Predicated region
        $region45: #{tpu_custom_call.1} parent=43 // pred_check
          %p334 = pneg %p109
        $region46: #{tpu_custom_call.1} parent=43 // pred_check_branch
          %336 = sbr.rel (%p334) target = $region48
        $region47: #{tpu_custom_call.1} parent=43 // pred_region
          %p337 = scmp.lt.s32.totalorder %s18, 1
          %s338 = scalar_select %p337, %s18, 1
          %s339 = smul.addr %s338, 8
          %s340 = scalar_lea.vmem %s3, %s339
        $region48: #{tpu_custom_call.1} parent=43 // pred_fallthru
          _
      $region44: #{tpu_custom_call.1} parent=5 // pred_fallthru
        _
    $region6: #{tpu_custom_call.1} parent=1 // loop_footer
      %s16 = sadd.s32 1, %s12
    $region7: #{tpu_custom_call.1} parent=1 // loop_footer_branch
      %11 = sbr.rel target = $region3
    $region8: #{tpu_custom_call.1} parent=1 // loop_exit
      _
    %341 = vsyncpa [#allocation3], 1
    %s342 = scalar_lea.sflag [#allocation3], 1
    %343 = vsyncpa %s342, 1

</llo_original>
